<compile_context>
chip_gen: v7x
topology: tpu7x:2x2x1
jax: 0.10.0
libtpu: 0.0.40
codegen_flags: <defaults>
</compile_context>

<pallas_src>
import functools

import jax
import jax.numpy as jnp
from jax.experimental import pallas as pl
from jax.experimental.pallas import tpu as pltpu


def ca_attention_kernel(x_ref, w1_ref, fh_ref, fw_ref, pool_ref,
                        exph_ref, expw_ref, o_ref):
    """Processes one batch block (bn elements) per grid step.

    x_ref   : (bn, C, H*W) f32   lane-dense image (W folded into lanes)
    w1_ref  : (Cmid, C)     bf16  conv_1x1 weight
    fh_ref  : (C, Cmid)     bf16  F_h weight
    fw_ref  : (C, Cmid)     bf16  F_w weight
    pool_ref: (H*W, H+W)    bf16  both coordinate-pool averaging matrices
    exph_ref: (H, H*W)      bf16  one-hot "broadcast s_h over W" matrix
    expw_ref: (W, H*W)      bf16  one-hot "broadcast s_w over H" matrix
    o_ref   : (bn, C, H*W)  f32
    """
    bn, C, HW = x_ref.shape
    H = exph_ref.shape[0]

    x = x_ref[...]                                                   # (bn,C,HW) f32

    # 1) Both coordinate pools (mean over W | mean over H) as ONE MXU matmul,
    #    batch block folded into M (bn*C rows); keeps the cross-lane W/H
    #    reductions off the XLU.
    pooled = jnp.dot(x.reshape(bn * C, HW).astype(jnp.bfloat16), pool_ref[...],
                     preferred_element_type=jnp.float32)             # (bn*C, H+W)

    for b in range(bn):                                              # bn static, tiny
        p_b = pooled[b * C:(b + 1) * C, :]                           # (C, H+W)

        # 2) conv_1x1 + ReLU on the "concatenated" pooled features (concat
        #    folded away: one matmul covers both halves).
        z = jnp.maximum(
            jnp.dot(w1_ref[...], p_b.astype(jnp.bfloat16),
                    preferred_element_type=jnp.float32), 0.0)        # (Cmid, H+W)
        z16 = z.astype(jnp.bfloat16)

        # 3) Only the *used* quadrants: F_h on the H half, F_w on the W half
        #    (the cross terms of a stacked matmul would be dead MXU/EUP work).
        s_h = jax.nn.sigmoid(
            jnp.dot(fh_ref[...], z16[:, :H],
                    preferred_element_type=jnp.float32))             # (C, H)
        s_w = jax.nn.sigmoid(
            jnp.dot(fw_ref[...], z16[:, H:],
                    preferred_element_type=jnp.float32))             # (C, W)

        # 4) Expand each gate to lane-dense (C, HW) with a half-sized bf16
        #    matmul against its one-hot expansion matrix (exact 0/1 in bf16),
        #    instead of a block-diagonal product with dead halves.
        g_h = jnp.dot(s_h.astype(jnp.bfloat16), exph_ref[...],
                      preferred_element_type=jnp.float32)            # (C, HW)
        g_w = jnp.dot(s_w.astype(jnp.bfloat16), expw_ref[...],
                      preferred_element_type=jnp.float32)            # (C, HW)

        # out = x * s_h (bcast over W) * s_w (bcast over H); 256-lane dense store.
        o_ref[b] = x[b] * g_h * g_w


@functools.partial(jax.jit, static_argnames=("batch_block",))
def ca_attention(x, w1, fh, fw, batch_block=None):
    """x: (N, C, H, W) f32; w1: (Cmid, C); fh, fw: (C, Cmid).  Returns (N,C,H,W)."""
    N, C, H, W = x.shape
    Cmid = w1.shape[0]
    HW = H * W

    if batch_block is None:
        # At most 2 sequential grid steps (amortizes per-step pipeline overhead
        # on single-TC v5e/v6e) while keeping >=2 "parallel" steps when N >= 2
        # for v7x's two TensorCores.  Pass batch_block=N to fully fuse.
        batch_block = N // 2 if (N >= 2 and N % 2 == 0) else 1
    assert N % batch_block == 0, "batch_block must divide N"
    grid_n = N // batch_block

    # Lane-dense layout: (N, C, H, W) -> (N, C, H*W).  Trailing-dim merge only.
    x2d = x.reshape(N, C, HW)

    # Constant pooling / expansion matrices (constant-folded under jit; tiny).
    eye_h = jnp.eye(H, dtype=jnp.float32)
    eye_w = jnp.eye(W, dtype=jnp.float32)
    rep_h = jnp.repeat(eye_h, W, axis=0)            # (HW, H): row h*W+w -> e_h
    til_w = jnp.tile(eye_w, (H, 1))                 # (HW, W): row h*W+w -> e_w
    # x2d @ pool = [mean over W | mean over H]; 1/W, 1/H are exact in bf16.
    pool = jnp.concatenate([rep_h / W, til_w / H], axis=1).astype(jnp.bfloat16)
    exp_h = rep_h.T.astype(jnp.bfloat16)            # (H, HW) one-hot, exact in bf16
    exp_w = til_w.T.astype(jnp.bfloat16)            # (W, HW) one-hot, exact in bf16

    w1_b = w1.astype(jnp.bfloat16)                  # (Cmid, C)
    fh_b = fh.astype(jnp.bfloat16)                  # (C, Cmid)
    fw_b = fw.astype(jnp.bfloat16)                  # (C, Cmid)

    out2d = pl.pallas_call(
        ca_attention_kernel,
        out_shape=jax.ShapeDtypeStruct((N, C, HW), x.dtype),
        grid_spec=pltpu.PrefetchScalarGridSpec(
            num_scalar_prefetch=0,
            grid=(grid_n,),
            in_specs=[
                pl.BlockSpec((batch_block, C, HW), lambda n: (n, 0, 0)),
                # Invariant operands: constant index_map -> pipeline elides
                # re-DMA across grid steps.
                pl.BlockSpec((Cmid, C), lambda n: (0, 0)),
                pl.BlockSpec((C, Cmid), lambda n: (0, 0)),
                pl.BlockSpec((C, Cmid), lambda n: (0, 0)),
                pl.BlockSpec((HW, H + W), lambda n: (0, 0)),
                pl.BlockSpec((H, HW), lambda n: (0, 0)),
                pl.BlockSpec((W, HW), lambda n: (0, 0)),
            ],
            out_specs=pl.BlockSpec((batch_block, C, HW), lambda n: (n, 0, 0)),
        ),
        compiler_params=pltpu.CompilerParams(
            dimension_semantics=("parallel",),       # >=2 steps -> both v7x TCs busy
            vmem_limit_bytes=32 * 1024 * 1024,       # scale-up guard (blocks tiny here)
        ),
    )(x2d, w1_b, fh_b, fw_b, pool, exp_h, exp_w)

    return out2d.reshape(N, C, H, W)


def ca_attention_ref(x, w1, fh, fw):
    # Pure-JAX f32 reference mirroring the PyTorch forward.
    x_h = jnp.mean(x, axis=3)                                          # (N,C,H)
    x_w = jnp.mean(x, axis=2)                                          # (N,C,W)
    z_h = jax.nn.relu(jnp.einsum('mc,nch->nmh', w1, x_h))
    z_w = jax.nn.relu(jnp.einsum('mc,ncw->nmw', w1, x_w))
    s_h = jax.nn.sigmoid(jnp.einsum('cm,nmh->nch', fh, z_h))
    s_w = jax.nn.sigmoid(jnp.einsum('cm,nmw->ncw', fw, z_w))
    return x * s_h[:, :, :, None] * s_w[:, :, None, :]


if __name__ == "__main__":
    # Small shapes consistent with the module: channel=32, h=w=16, reduction=8.
    N, C, H, W = 2, 32, 16, 16
    reduction = 8
    Cmid = C // reduction

    key = jax.random.PRNGKey(0)
    kx, k1, k2, k3 = jax.random.split(key, 4)
    x = jax.random.normal(kx, (N, C, H, W), dtype=jnp.float32)

    # Deterministic parameter init (1x1 conv weights, no bias).
    w1 = jax.random.normal(k1, (Cmid, C), dtype=jnp.float32) * 0.1   # conv_1x1
    fh = jax.random.normal(k2, (C, Cmid), dtype=jnp.float32) * 0.1   # F_h
    fw = jax.random.normal(k3, (C, Cmid), dtype=jnp.float32) * 0.1   # F_w

    out = jax.block_until_ready(ca_attention(x, w1, fh, fw))
    ref = ca_attention_ref(x, w1, fh, fw)

    assert out.shape == (N, C, H, W)
    # bf16 MXU feeds (x, pooled, z, gates) with f32 accumulation -> relaxed
    # tolerance vs the pure-f32 reference.
    max_err = float(jnp.max(jnp.abs(out - ref)))
    assert jnp.allclose(out, ref, atol=1e-2, rtol=1e-2), max_err

    print("KERNEL_OK")
</pallas_src>

<mosaic_0001>
module attributes {stable_mosaic.version = 11 : i64} {
  func.func @ca_attention_kernel(%arg0: i32, %arg1: memref<1x32x256xf32, #tpu.memory_space<vmem>>, %arg2: memref<4x32xbf16, #tpu.memory_space<vmem>>, %arg3: memref<32x4xbf16, #tpu.memory_space<vmem>>, %arg4: memref<32x4xbf16, #tpu.memory_space<vmem>>, %arg5: memref<256x32xbf16, #tpu.memory_space<vmem>>, %arg6: memref<16x256xbf16, #tpu.memory_space<vmem>>, %arg7: memref<16x256xbf16, #tpu.memory_space<vmem>>, %arg8: memref<1x32x256xf32, #tpu.memory_space<vmem>>) attributes {dimension_semantics = [#tpu.dimension_semantics<parallel>], iteration_bounds = array<i64: 2>, scalar_prefetch = 0 : i64, scratch_operands = 0 : i64, tpu.core_type = #tpu.core_type<tc>, window_params = [{transform_indices = @transform_0, window_bounds = array<i64: 1, 32, 256>}, {pipeline_mode = #tpu.pipeline_mode<synchronous>, transform_indices = @transform_1, window_bounds = array<i64: 4, 32>}, {pipeline_mode = #tpu.pipeline_mode<synchronous>, transform_indices = @transform_2, window_bounds = array<i64: 32, 4>}, {pipeline_mode = #tpu.pipeline_mode<synchronous>, transform_indices = @transform_3, window_bounds = array<i64: 32, 4>}, {pipeline_mode = #tpu.pipeline_mode<synchronous>, transform_indices = @transform_4, window_bounds = array<i64: 256, 32>}, {pipeline_mode = #tpu.pipeline_mode<synchronous>, transform_indices = @transform_5, window_bounds = array<i64: 16, 256>}, {pipeline_mode = #tpu.pipeline_mode<synchronous>, transform_indices = @transform_6, window_bounds = array<i64: 16, 256>}, {transform_indices = @transform_7, window_bounds = array<i64: 1, 32, 256>}]} {
    %c0 = arith.constant 0 : index
    %c0_0 = arith.constant 0 : index
    %c0_1 = arith.constant 0 : index
    %0 = vector.load %arg1[%c0, %c0_0, %c0_1] : memref<1x32x256xf32, #tpu.memory_space<vmem>>, vector<1x32x256xf32>
    %1 = vector.shape_cast %0 : vector<1x32x256xf32> to vector<32x256xf32>
    %2 = arith.truncf %1 : vector<32x256xf32> to vector<32x256xbf16>
    %c0_2 = arith.constant 0 : index
    %c0_3 = arith.constant 0 : index
    %3 = vector.load %arg5[%c0_2, %c0_3] : memref<256x32xbf16, #tpu.memory_space<vmem>>, vector<256x32xbf16>
    %cst = arith.constant dense<0.000000e+00> : vector<32x32xf32>
    %4 = tpu.matmul %2, %3, %cst {dimension_numbers = #tpu.dot_dimension_numbers<[1], [0], [0], [1], [0, 0, 1, 1], [], []>} : vector<32x256xbf16>, vector<256x32xbf16>, vector<32x32xf32> -> vector<32x32xf32>
    %c0_4 = arith.constant 0 : index
    %c0_5 = arith.constant 0 : index
    %5 = vector.load %arg2[%c0_4, %c0_5] : memref<4x32xbf16, #tpu.memory_space<vmem>>, vector<4x32xbf16>
    %6 = arith.truncf %4 : vector<32x32xf32> to vector<32x32xbf16>
    %cst_6 = arith.constant dense<0.000000e+00> : vector<4x32xf32>
    %7 = tpu.matmul %5, %6, %cst_6 {dimension_numbers = #tpu.dot_dimension_numbers<[1], [0], [0], [1], [0, 0, 1, 1], [], []>} : vector<4x32xbf16>, vector<32x32xbf16>, vector<4x32xf32> -> vector<4x32xf32>
    %cst_7 = arith.constant 0.000000e+00 : f32
    %8 = vector.broadcast %cst_7 : f32 to vector<4x32xf32>
    %9 = arith.maximumf %7, %8 : vector<4x32xf32>
    %10 = arith.truncf %9 : vector<4x32xf32> to vector<4x32xbf16>
    %c0_8 = arith.constant 0 : index
    %c0_9 = arith.constant 0 : index
    %11 = vector.load %arg3[%c0_8, %c0_9] : memref<32x4xbf16, #tpu.memory_space<vmem>>, vector<32x4xbf16>
    %12 = vector.extract_strided_slice %10 {offsets = [0, 0], sizes = [4, 16], strides = [1, 1]} : vector<4x32xbf16> to vector<4x16xbf16>
    %cst_10 = arith.constant dense<0.000000e+00> : vector<32x16xf32>
    %13 = tpu.matmul %11, %12, %cst_10 {dimension_numbers = #tpu.dot_dimension_numbers<[1], [0], [0], [1], [0, 0, 1, 1], [], []>} : vector<32x4xbf16>, vector<4x16xbf16>, vector<32x16xf32> -> vector<32x16xf32>
    %14 = arith.negf %13 : vector<32x16xf32>
    %15 = math.exp %14 : vector<32x16xf32>
    %cst_11 = arith.constant 1.000000e+00 : f32
    %16 = vector.broadcast %cst_11 : f32 to vector<32x16xf32>
    %17 = arith.addf %16, %15 : vector<32x16xf32>
    %18 = arith.divf %16, %17 : vector<32x16xf32>
    %c0_12 = arith.constant 0 : index
    %c0_13 = arith.constant 0 : index
    %19 = vector.load %arg4[%c0_12, %c0_13] : memref<32x4xbf16, #tpu.memory_space<vmem>>, vector<32x4xbf16>
    %20 = vector.extract_strided_slice %10 {offsets = [0, 16], sizes = [4, 16], strides = [1, 1]} : vector<4x32xbf16> to vector<4x16xbf16>
    %cst_14 = arith.constant dense<0.000000e+00> : vector<32x16xf32>
    %21 = tpu.matmul %19, %20, %cst_14 {dimension_numbers = #tpu.dot_dimension_numbers<[1], [0], [0], [1], [0, 0, 1, 1], [], []>} : vector<32x4xbf16>, vector<4x16xbf16>, vector<32x16xf32> -> vector<32x16xf32>
    %22 = arith.negf %21 : vector<32x16xf32>
    %23 = math.exp %22 : vector<32x16xf32>
    %cst_15 = arith.constant 1.000000e+00 : f32
    %24 = vector.broadcast %cst_15 : f32 to vector<32x16xf32>
    %25 = arith.addf %24, %23 : vector<32x16xf32>
    %26 = arith.divf %24, %25 : vector<32x16xf32>
    %27 = arith.truncf %18 : vector<32x16xf32> to vector<32x16xbf16>
    %c0_16 = arith.constant 0 : index
    %c0_17 = arith.constant 0 : index
    %28 = vector.load %arg6[%c0_16, %c0_17] : memref<16x256xbf16, #tpu.memory_space<vmem>>, vector<16x256xbf16>
    %cst_18 = arith.constant dense<0.000000e+00> : vector<32x256xf32>
    %29 = tpu.matmul %27, %28, %cst_18 {dimension_numbers = #tpu.dot_dimension_numbers<[1], [0], [0], [1], [0, 0, 1, 1], [], []>} : vector<32x16xbf16>, vector<16x256xbf16>, vector<32x256xf32> -> vector<32x256xf32>
    %30 = arith.truncf %26 : vector<32x16xf32> to vector<32x16xbf16>
    %c0_19 = arith.constant 0 : index
    %c0_20 = arith.constant 0 : index
    %31 = vector.load %arg7[%c0_19, %c0_20] : memref<16x256xbf16, #tpu.memory_space<vmem>>, vector<16x256xbf16>
    %cst_21 = arith.constant dense<0.000000e+00> : vector<32x256xf32>
    %32 = tpu.matmul %30, %31, %cst_21 {dimension_numbers = #tpu.dot_dimension_numbers<[1], [0], [0], [1], [0, 0, 1, 1], [], []>} : vector<32x16xbf16>, vector<16x256xbf16>, vector<32x256xf32> -> vector<32x256xf32>
    %33 = vector.shape_cast %0 : vector<1x32x256xf32> to vector<32x256xf32>
    %34 = arith.mulf %33, %29 : vector<32x256xf32>
    %35 = arith.mulf %34, %32 : vector<32x256xf32>
    %c0_22 = arith.constant 0 : index
    %c0_23 = arith.constant 0 : index
    %c0_24 = arith.constant 0 : index
    %36 = vector.load %arg8[%c0_22, %c0_23, %c0_24] : memref<1x32x256xf32, #tpu.memory_space<vmem>>, vector<1x32x256xf32>
    %37 = vector.shape_cast %36 : vector<1x32x256xf32> to vector<32x256xf32>
    %38 = vector.shape_cast %35 : vector<32x256xf32> to vector<1x32x256xf32>
    tpu.vector_store %arg8[%c0_22, %c0_23, %c0_24], %38 {strides = array<i32>} : memref<1x32x256xf32, #tpu.memory_space<vmem>>, vector<1x32x256xf32>,
    return
  }
  func.func @transform_0(%arg0: i32) -> (i32, i32, i32) {
    %c0_i32 = arith.constant 0 : i32
    %c0_i32_0 = arith.constant 0 : i32
    %c0_i32_1 = arith.constant 0 : i32
    return %arg0, %c0_i32, %c0_i32_0 : i32, i32, i32
  }
  func.func @transform_1(%arg0: i32) -> (i32, i32) {
    %c0_i32 = arith.constant 0 : i32
    %c0_i32_0 = arith.constant 0 : i32
    %c0_i32_1 = arith.constant 0 : i32
    return %c0_i32, %c0_i32_0 : i32, i32
  }
  func.func @transform_2(%arg0: i32) -> (i32, i32) {
    %c0_i32 = arith.constant 0 : i32
    %c0_i32_0 = arith.constant 0 : i32
    %c0_i32_1 = arith.constant 0 : i32
    return %c0_i32, %c0_i32_0 : i32, i32
  }
  func.func @transform_3(%arg0: i32) -> (i32, i32) {
    %c0_i32 = arith.constant 0 : i32
    %c0_i32_0 = arith.constant 0 : i32
    %c0_i32_1 = arith.constant 0 : i32
    return %c0_i32, %c0_i32_0 : i32, i32
  }
  func.func @transform_4(%arg0: i32) -> (i32, i32) {
    %c0_i32 = arith.constant 0 : i32
    %c0_i32_0 = arith.constant 0 : i32
    %c0_i32_1 = arith.constant 0 : i32
    return %c0_i32, %c0_i32_0 : i32, i32
  }
  func.func @transform_5(%arg0: i32) -> (i32, i32) {
    %c0_i32 = arith.constant 0 : i32
    %c0_i32_0 = arith.constant 0 : i32
    %c0_i32_1 = arith.constant 0 : i32
    return %c0_i32, %c0_i32_0 : i32, i32
  }
  func.func @transform_6(%arg0: i32) -> (i32, i32) {
    %c0_i32 = arith.constant 0 : i32
    %c0_i32_0 = arith.constant 0 : i32
    %c0_i32_1 = arith.constant 0 : i32
    return %c0_i32, %c0_i32_0 : i32, i32
  }
  func.func @transform_7(%arg0: i32) -> (i32, i32, i32) {
    %c0_i32 = arith.constant 0 : i32
    %c0_i32_0 = arith.constant 0 : i32
    %c0_i32_1 = arith.constant 0 : i32
    return %arg0, %c0_i32, %c0_i32_0 : i32, i32, i32
  }
}

</mosaic_0001>

<llo_original>
// kernel: ca_attention.1
$region0: #{ca_attention.1}
  #allocation0 [shape = 'u32[]', space=smem, size = 0x4, offset = 0x4, fixed_abs, tag = 'smem constant byte address 0x4 - core index']
  #allocation1 [shape = 'u32[144,128]{1,0:T(1,128)}', space=vmem, size = 0x12000, scoped, tag = 'internal scratch']
  %s0 = inlined_call_operand.vmem [shape: f32[2,32,256], index: 0, kind: input, shape index: {}]
  %s1 = inlined_call_operand.vmem [shape: bf16[4,32], index: 1, kind: input, shape index: {}]
  %s2 = inlined_call_operand.vmem [shape: bf16[32,4], index: 2, kind: input, shape index: {}]
  %s3 = inlined_call_operand.vmem [shape: bf16[32,4], index: 3, kind: input, shape index: {}]
  %s4 = inlined_call_operand.vmem [shape: bf16[256,32], index: 4, kind: input, shape index: {}]
  %s5 = inlined_call_operand.vmem [shape: bf16[16,256], index: 5, kind: input, shape index: {}]
  %s6 = inlined_call_operand.vmem [shape: bf16[16,256], index: 6, kind: input, shape index: {}]
  %s7 = inlined_call_operand.vmem [shape: f32[2,32,256], index: 7, kind: output, shape index: {}]
  %s8 = sld [smem:[#allocation0]]
  $region61: #{ca_attention.1} parent=0
    _
  %s10 = ssub.s32 1, %s8
  %s11 = scalar_select 0, %s10, %s8
  loop: start=0, step=1, limit=4
  $region2: #{ca_attention.1} parent=0 // loop_pre_header
    _
  $region3: #{ca_attention.1} parent=0 // loop_header
    %s13 = sphi 0, %s17
    %p14 = scmp.ge.s32.totalorder %s13, 4
    %s23 = sphi 0, %s25
    %s26 = sphi 0, %s23
    %s27 = sphi 0, %s26
    %s43 = sphi 0, %s27
    %s47 = sphi 0, %s47
    %s49 = sphi 0, %s47
    %s50 = sphi 0, %s49
    %s64 = sphi 0, %s50
    %s68 = sphi 0, %s68
    %s70 = sphi 0, %s68
    %s71 = sphi 0, %s70
    %s85 = sphi 0, %s71
    %s89 = sphi 0, %s89
    %s91 = sphi 0, %s89
    %s92 = sphi 0, %s91
    %s106 = sphi 0, %s92
    %s110 = sphi 0, %s110
    %s112 = sphi 0, %s110
    %s113 = sphi 0, %s112
    %s127 = sphi 0, %s113
    %s131 = sphi 0, %s131
    %s133 = sphi 0, %s131
    %s134 = sphi 0, %s133
    %s148 = sphi 0, %s134
    %s152 = sphi 0, %s152
    %s154 = sphi 0, %s152
    %s155 = sphi 0, %s154
    %s169 = sphi 0, %s155
    %s175 = sphi 0, %s177
    %s178 = sphi 0, %s175
    %s179 = sphi 0, %s178
    %s195 = sphi 0, %s179
  $region4: #{ca_attention.1} parent=0 // loop_header_branch
    %16 = sbr.rel (%p14) target = $region8
  $region5: #{ca_attention.1} parent=0 // loop_body
    %s18 = ssub.s32 %s13, 1
    %s19 = ssub.s32 %s13, 2
    %s20 = sadd.s32 %s13, 1
    %s21 = ssub.s32 %s13, %s20
    %p22 = scmp.eq.s32.totalorder %s21, 0
    %s24 = sadd.s32 %s23, 1
    %s25 = scalar_select %p22, %s23, %s24
    %p28 = pneg %p22
    %p29 = scmp.eq.s32.totalorder %s13, 1
    %p30 = por %p28, %p29
    %p31 = scmp.ne.s32.totalorder %s23, %s26
    %p32 = scmp.eq.s32.totalorder %s13, 0
    %p33 = por %p31, %p32
    %p34 = scmp.ne.s32.totalorder %s23, %s26
    %p35 = scmp.eq.s32.totalorder %s18, 1
    %p36 = por %p34, %p35
    %p37 = scmp.ne.s32.totalorder %s26, %s27
    %p38 = scmp.eq.s32.totalorder %s18, 0
    %p39 = por %p37, %p38
    %p40 = scmp.ne.s32.totalorder %s26, %s27
    %p41 = scmp.eq.s32.totalorder %s19, 1
    %p42 = por %p40, %p41
    %p44 = scmp.ne.s32.totalorder %s27, %s43
    %p45 = scmp.eq.s32.totalorder %s19, 0
    %p46 = por %p44, %p45
    %s48 = sadd.s32 %s47, 1
    %p51 = scmp.eq.s32.totalorder %s13, 1
    %p52 = scmp.ne.s32.totalorder %s47, %s49
    %p53 = scmp.eq.s32.totalorder %s13, 0
    %p54 = por %p52, %p53
    %p55 = scmp.ne.s32.totalorder %s47, %s49
    %p56 = scmp.eq.s32.totalorder %s18, 1
    %p57 = por %p55, %p56
    %p58 = scmp.ne.s32.totalorder %s49, %s50
    %p59 = scmp.eq.s32.totalorder %s18, 0
    %p60 = por %p58, %p59
    %p61 = scmp.ne.s32.totalorder %s49, %s50
    %p62 = scmp.eq.s32.totalorder %s19, 1
    %p63 = por %p61, %p62
    %p65 = scmp.ne.s32.totalorder %s50, %s64
    %p66 = scmp.eq.s32.totalorder %s19, 0
    %p67 = por %p65, %p66
    %s69 = sadd.s32 %s68, 1
    %p72 = scmp.eq.s32.totalorder %s13, 1
    %p73 = scmp.ne.s32.totalorder %s68, %s70
    %p74 = scmp.eq.s32.totalorder %s13, 0
    %p75 = por %p73, %p74
    %p76 = scmp.ne.s32.totalorder %s68, %s70
    %p77 = scmp.eq.s32.totalorder %s18, 1
    %p78 = por %p76, %p77
    %p79 = scmp.ne.s32.totalorder %s70, %s71
    %p80 = scmp.eq.s32.totalorder %s18, 0
    %p81 = por %p79, %p80
    %p82 = scmp.ne.s32.totalorder %s70, %s71
    %p83 = scmp.eq.s32.totalorder %s19, 1
    %p84 = por %p82, %p83
    %p86 = scmp.ne.s32.totalorder %s71, %s85
    %p87 = scmp.eq.s32.totalorder %s19, 0
    %p88 = por %p86, %p87
    %s90 = sadd.s32 %s89, 1
    %p93 = scmp.eq.s32.totalorder %s13, 1
    %p94 = scmp.ne.s32.totalorder %s89, %s91
    %p95 = scmp.eq.s32.totalorder %s13, 0
    %p96 = por %p94, %p95
    %p97 = scmp.ne.s32.totalorder %s89, %s91
    %p98 = scmp.eq.s32.totalorder %s18, 1
    %p99 = por %p97, %p98
    %p100 = scmp.ne.s32.totalorder %s91, %s92
    %p101 = scmp.eq.s32.totalorder %s18, 0
    %p102 = por %p100, %p101
    %p103 = scmp.ne.s32.totalorder %s91, %s92
    %p104 = scmp.eq.s32.totalorder %s19, 1
    %p105 = por %p103, %p104
    %p107 = scmp.ne.s32.totalorder %s92, %s106
    %p108 = scmp.eq.s32.totalorder %s19, 0
    %p109 = por %p107, %p108
    %s111 = sadd.s32 %s110, 1
    %p114 = scmp.eq.s32.totalorder %s13, 1
    %p115 = scmp.ne.s32.totalorder %s110, %s112
    %p116 = scmp.eq.s32.totalorder %s13, 0
    %p117 = por %p115, %p116
    %p118 = scmp.ne.s32.totalorder %s110, %s112
    %p119 = scmp.eq.s32.totalorder %s18, 1
    %p120 = por %p118, %p119
    %p121 = scmp.ne.s32.totalorder %s112, %s113
    %p122 = scmp.eq.s32.totalorder %s18, 0
    %p123 = por %p121, %p122
    %p124 = scmp.ne.s32.totalorder %s112, %s113
    %p125 = scmp.eq.s32.totalorder %s19, 1
    %p126 = por %p124, %p125
    %p128 = scmp.ne.s32.totalorder %s113, %s127
    %p129 = scmp.eq.s32.totalorder %s19, 0
    %p130 = por %p128, %p129
    %s132 = sadd.s32 %s131, 1
    %p135 = scmp.eq.s32.totalorder %s13, 1
    %p136 = scmp.ne.s32.totalorder %s131, %s133
    %p137 = scmp.eq.s32.totalorder %s13, 0
    %p138 = por %p136, %p137
    %p139 = scmp.ne.s32.totalorder %s131, %s133
    %p140 = scmp.eq.s32.totalorder %s18, 1
    %p141 = por %p139, %p140
    %p142 = scmp.ne.s32.totalorder %s133, %s134
    %p143 = scmp.eq.s32.totalorder %s18, 0
    %p144 = por %p142, %p143
    %p145 = scmp.ne.s32.totalorder %s133, %s134
    %p146 = scmp.eq.s32.totalorder %s19, 1
    %p147 = por %p145, %p146
    %p149 = scmp.ne.s32.totalorder %s134, %s148
    %p150 = scmp.eq.s32.totalorder %s19, 0
    %p151 = por %p149, %p150
    %s153 = sadd.s32 %s152, 1
    %p156 = scmp.eq.s32.totalorder %s13, 1
    %p157 = scmp.ne.s32.totalorder %s152, %s154
    %p158 = scmp.eq.s32.totalorder %s13, 0
    %p159 = por %p157, %p158
    %p160 = scmp.ne.s32.totalorder %s152, %s154
    %p161 = scmp.eq.s32.totalorder %s18, 1
    %p162 = por %p160, %p161
    %p163 = scmp.ne.s32.totalorder %s154, %s155
    %p164 = scmp.eq.s32.totalorder %s18, 0
    %p165 = por %p163, %p164
    %p166 = scmp.ne.s32.totalorder %s154, %s155
    %p167 = scmp.eq.s32.totalorder %s19, 1
    %p168 = por %p166, %p167
    %p170 = scmp.ne.s32.totalorder %s155, %s169
    %p171 = scmp.eq.s32.totalorder %s19, 0
    %p172 = por %p170, %p171
    %s173 = ssub.s32 %s13, %s20
    %p174 = scmp.eq.s32.totalorder %s173, 0
    %s176 = sadd.s32 %s175, 1
    %s177 = scalar_select %p174, %s175, %s176
    %p180 = pneg %p174
    %p181 = scmp.eq.s32.totalorder %s13, 1
    %p182 = por %p180, %p181
    %p183 = scmp.ne.s32.totalorder %s175, %s178
    %p184 = scmp.eq.s32.totalorder %s13, 0
    %p185 = por %p183, %p184
    %p186 = scmp.ne.s32.totalorder %s175, %s178
    %p187 = scmp.eq.s32.totalorder %s18, 1
    %p188 = por %p186, %p187
    %p189 = scmp.ne.s32.totalorder %s178, %s179
    %p190 = scmp.eq.s32.totalorder %s18, 0
    %p191 = por %p189, %p190
    %p192 = scmp.ne.s32.totalorder %s178, %s179
    %p193 = scmp.eq.s32.totalorder %s19, 1
    %p194 = por %p192, %p193
    %p196 = scmp.ne.s32.totalorder %s179, %s195
    %p197 = scmp.eq.s32.totalorder %s19, 0
    %p198 = por %p196, %p197
    %p199 = scmp.le.s32.totalorder 1, %s13
    %p200 = scmp.lt.s32.totalorder %s13, 3
    %p201 = pnand %p199, %p200
    %p202 = pneg %p201
    // Predicated region
    $region9: #{ca_attention.1} parent=5 // pred_check
      _
    $region10: #{ca_attention.1} parent=5 // pred_check_branch
      %204 = sbr.rel (%p201) target = $region12
    $region11: #{ca_attention.1} parent=5 // pred_region
      %s205 = ssub.s32 %s13, 1
      // Predicated region
      $region13: #{ca_attention.1} parent=11 // pred_check
        %p206 = pneg %p60
      $region14: #{ca_attention.1} parent=11 // pred_check_branch
        %208 = sbr.rel (%p206) target = $region16
      $region15: #{ca_attention.1} parent=11 // pred_region
        _
      $region16: #{ca_attention.1} parent=11 // pred_fallthru
        _
      // Predicated region
      $region17: #{ca_attention.1} parent=11 // pred_check
        %p209 = pneg %p81
      $region18: #{ca_attention.1} parent=11 // pred_check_branch
        %211 = sbr.rel (%p209) target = $region20
      $region19: #{ca_attention.1} parent=11 // pred_region
        _
      $region20: #{ca_attention.1} parent=11 // pred_fallthru
        _
      // Predicated region
      $region21: #{ca_attention.1} parent=11 // pred_check
        %p212 = pneg %p102
      $region22: #{ca_attention.1} parent=11 // pred_check_branch
        %214 = sbr.rel (%p212) target = $region24
      $region23: #{ca_attention.1} parent=11 // pred_region
        _
      $region24: #{ca_attention.1} parent=11 // pred_fallthru
        _
      // Predicated region
      $region25: #{ca_attention.1} parent=11 // pred_check
        %p215 = pneg %p123
      $region26: #{ca_attention.1} parent=11 // pred_check_branch
        %217 = sbr.rel (%p215) target = $region28
      $region27: #{ca_attention.1} parent=11 // pred_region
        _
      $region28: #{ca_attention.1} parent=11 // pred_fallthru
        _
      // Predicated region
      $region29: #{ca_attention.1} parent=11 // pred_check
        %p218 = pneg %p144
      $region30: #{ca_attention.1} parent=11 // pred_check_branch
        %220 = sbr.rel (%p218) target = $region32
      $region31: #{ca_attention.1} parent=11 // pred_region
        _
      $region32: #{ca_attention.1} parent=11 // pred_fallthru
        _
      // Predicated region
      $region33: #{ca_attention.1} parent=11 // pred_check
        %p221 = pneg %p165
      $region34: #{ca_attention.1} parent=11 // pred_check_branch
        %223 = sbr.rel (%p221) target = $region36
      $region35: #{ca_attention.1} parent=11 // pred_region
        _
      $region36: #{ca_attention.1} parent=11 // pred_fallthru
        _
    $region12: #{ca_attention.1} parent=5 // pred_fallthru
      _
    %p224 = scmp.lt.s32.totalorder %s13, 2
    // Predicated region
    $region37: #{ca_attention.1} parent=5 // pred_check
      %p225 = pneg %p224
    $region38: #{ca_attention.1} parent=5 // pred_check_branch
      %227 = sbr.rel (%p225) target = $region40
    $region39: #{ca_attention.1} parent=5 // pred_region
      // Predicated region
      $region41: #{ca_attention.1} parent=39 // pred_check
        %p228 = pneg %p33
      $region42: #{ca_attention.1} parent=39 // pred_check_branch
        %230 = sbr.rel (%p228) target = $region44
      $region43: #{ca_attention.1} parent=39 // pred_region
        %p231 = scmp.lt.s32.totalorder %s13, 1
        %s232 = scalar_select %p231, %s13, 1
        %s233 = smul.addr %s232, 8
        %s234 = smul.addr %s233, 8
        %s235 = scalar_lea.vmem %s0, %s234
      $region44: #{ca_attention.1} parent=39 // pred_fallthru
        _
    $region40: #{ca_attention.1} parent=5 // pred_fallthru
      _
    %p236 = scmp.le.s32.totalorder 1, %s13
    %p237 = scmp.lt.s32.totalorder %s13, 3
    %p238 = pnand %p236, %p237
    %p239 = pneg %p238
    // Predicated region
    $region45: #{ca_attention.1} parent=5 // pred_check
      _
    $region46: #{ca_attention.1} parent=5 // pred_check_branch
      %241 = sbr.rel (%p238) target = $region48
    $region47: #{ca_attention.1} parent=5 // pred_region
      %s242 = ssub.s32 %s13, 1
      %p243 = scmp.lt.s32.totalorder %s18, 1
      %s244 = scalar_select %p243, %s18, 1
      %s245 = smul.addr %s244, 8
      %s246 = smul.addr %s245, 8
      %s247 = scalar_lea.vmem %s0, %s246
      %p248 = pneg %p39
      %p249 = pneg %p36
      %p250 = pneg %p60
      %p251 = pneg %p57
      %p252 = pneg %p81
      %p253 = pneg %p78
      %p254 = pneg %p102
      %p255 = pneg %p99
      %p256 = pneg %p123
      %p257 = pneg %p120
      %p258 = pneg %p144
      %p259 = pneg %p141
      %p260 = pneg %p165
      %p261 = pneg %p162
      %p262 = pneg %p191
      %p263 = pneg %p188
      %p264 = scmp.lt.s32.totalorder %s18, 1
      %s265 = scalar_select %p264, %s18, 1
      %s266 = smul.addr %s265, 8
      %s267 = smul.addr %s266, 8
      %s268 = scalar_lea.vmem %s7, %s267
      %p269 = scmp.lt.s32.totalorder %s18, 1
      %s270 = scalar_select %p269, %s18, 1
      %s271 = smul.addr %s270, 8
      %s272 = smul.addr %s271, 8
      %s273 = scalar_lea.vmem %s0, %s272
      %p274 = scmp.lt.s32.totalorder %s18, 1
      %s275 = scalar_select %p274, %s18, 1
      %s276 = smul.addr %s275, 8
      %s277 = smul.addr %s276, 8
      %s278 = scalar_lea.vmem %s7, %s277
      %v280 = vld [vmem:[%s273] sm:$0xff]
      %v281 = vld [vmem:[%s273 + $0x8] sm:$0xff]
      %v282 = vld [vmem:[%s273 + $0x10] sm:$0xff]
      %v283 = vld [vmem:[%s273 + $0x18] sm:$0xff]
      %v284 = vld [vmem:[%s273 + $0x20] sm:$0xff]
      %v285 = vld [vmem:[%s273 + $0x28] sm:$0xff]
      %v286 = vld [vmem:[%s273 + $0x30] sm:$0xff]
      %v287 = vld [vmem:[%s273 + $0x38] sm:$0xff]
      %v288 = vpack.c.bf16 %v282, %v280
      %v289 = vpack.c.bf16 %v283, %v281
      %v290 = vpack.c.bf16 %v286, %v284
      %v291 = vpack.c.bf16 %v287, %v285
      %v292 = vld [vmem:[%s4] sm:$0xf]
      %v293 = vld [vmem:[%s4 + $0x4] sm:$0xf]
      %v294 = vld [vmem:[%s4 + $0x8] sm:$0xf]
      %v295 = vld [vmem:[%s4 + $0xc] sm:$0xf]
      %v296 = vld [vmem:[%s4 + $0x10] sm:$0xf]
      %v297 = vld [vmem:[%s4 + $0x14] sm:$0xf]
      %v298 = vld [vmem:[%s4 + $0x18] sm:$0xf]
      %v299 = vld [vmem:[%s4 + $0x1c] sm:$0xf]
      %v300 = vld [vmem:[%s4 + $0x20] sm:$0xf]
      %v301 = vld [vmem:[%s4 + $0x24] sm:$0xf]
      %v302 = vld [vmem:[%s4 + $0x28] sm:$0xf]
      %v303 = vld [vmem:[%s4 + $0x2c] sm:$0xf]
      %v304 = vld [vmem:[%s4 + $0x30] sm:$0xf]
      %v305 = vld [vmem:[%s4 + $0x34] sm:$0xf]
      %v306 = vld [vmem:[%s4 + $0x38] sm:$0xf]
      %v307 = vld [vmem:[%s4 + $0x3c] sm:$0xf]
      %v308 = vld [vmem:[%s4 + $0x40] sm:$0xf]
      %v309 = vld [vmem:[%s4 + $0x44] sm:$0xf]
      %v310 = vld [vmem:[%s4 + $0x48] sm:$0xf]
      %v311 = vld [vmem:[%s4 + $0x4c] sm:$0xf]
      %v312 = vld [vmem:[%s4 + $0x50] sm:$0xf]
      %v313 = vld [vmem:[%s4 + $0x54] sm:$0xf]
      %v314 = vld [vmem:[%s4 + $0x58] sm:$0xf]
      %v315 = vld [vmem:[%s4 + $0x5c] sm:$0xf]
      %v316 = vld [vmem:[%s4 + $0x60] sm:$0xf]
      %v317 = vld [vmem:[%s4 + $0x64] sm:$0xf]
      %v318 = vld [vmem:[%s4 + $0x68] sm:$0xf]
      %v319 = vld [vmem:[%s4 + $0x6c] sm:$0xf]
      %v320 = vld [vmem:[%s4 + $0x70] sm:$0xf]
      %v321 = vld [vmem:[%s4 + $0x74] sm:$0xf]
      %v322 = vld [vmem:[%s4 + $0x78] sm:$0xf]
      %v323 = vld [vmem:[%s4 + $0x7c] sm:$0xf]
      %v356 = vunpack.c.l.b16 %v292
      %v357 = vunpack.c.l.b16 %v293
      %v358 = vunpack.c.l.b16 %v294
      %v359 = vunpack.c.l.b16 %v295
      %v360 = vunpack.c.l.b16 %v296
      %v361 = vunpack.c.l.b16 %v297
      %v362 = vunpack.c.l.b16 %v298
      %v363 = vunpack.c.l.b16 %v299
      %v364 = vunpack.c.l.b16 %v300
      %v365 = vunpack.c.l.b16 %v301
      %v366 = vunpack.c.l.b16 %v302
      %v367 = vunpack.c.l.b16 %v303
      %v368 = vunpack.c.l.b16 %v304
      %v369 = vunpack.c.l.b16 %v305
      %v370 = vunpack.c.l.b16 %v306
      %v371 = vunpack.c.l.b16 %v307
      %v372 = vunpack.c.l.b16 %v308
      %v373 = vunpack.c.l.b16 %v309
      %v374 = vunpack.c.l.b16 %v310
      %v375 = vunpack.c.l.b16 %v311
      %v376 = vunpack.c.l.b16 %v312
      %v377 = vunpack.c.l.b16 %v313
      %v378 = vunpack.c.l.b16 %v314
      %v379 = vunpack.c.l.b16 %v315
      %v380 = vunpack.c.l.b16 %v316
      %v381 = vunpack.c.l.b16 %v317
      %v382 = vunpack.c.l.b16 %v318
      %v383 = vunpack.c.l.b16 %v319
      %v384 = vunpack.c.l.b16 %v320
      %v385 = vunpack.c.l.b16 %v321
      %v386 = vunpack.c.l.b16 %v322
      %v387 = vunpack.c.l.b16 %v323
      %v388 = vpack.c.b16 %v357, %v356
      %v389 = vpack.c.b16 %v359, %v358
      %v390 = vpack.c.b16 %v361, %v360
      %v391 = vpack.c.b16 %v363, %v362
      %v392 = vpack.c.b16 %v365, %v364
      %v393 = vpack.c.b16 %v367, %v366
      %v394 = vpack.c.b16 %v369, %v368
      %v395 = vpack.c.b16 %v371, %v370
      %v396 = vpack.c.b16 %v373, %v372
      %v397 = vpack.c.b16 %v375, %v374
      %v398 = vpack.c.b16 %v377, %v376
      %v399 = vpack.c.b16 %v379, %v378
      %v400 = vpack.c.b16 %v381, %v380
      %v401 = vpack.c.b16 %v383, %v382
      %v402 = vpack.c.b16 %v385, %v384
      %v403 = vpack.c.b16 %v387, %v386
      %420 = vmatprep.subr.bf16.mxu0 0
      %421 = vmatpush1.bf16.msra.mxu0 %v388
      %422 = vmatprep.subr.bf16.mxu0 0
      %423 = vmatpush1.bf16.msra.mxu0 %v389
      %424 = vmatprep.subr.bf16.mxu0 0
      %425 = vmatpush1.bf16.msra.mxu0 %v390
      %426 = vmatprep.subr.bf16.mxu0 0
      %427 = vmatpush1.bf16.msra.mxu0 %v391
      %428 = vmatprep.subr.bf16.mxu0 0
      %429 = vmatpush1.bf16.msra.mxu0 %v392
      %430 = vmatprep.subr.bf16.mxu0 0
      %431 = vmatpush1.bf16.msra.mxu0 %v393
      %432 = vmatprep.subr.bf16.mxu0 0
      %433 = vmatpush1.bf16.msra.mxu0 %v394
      %434 = vmatprep.subr.bf16.mxu0 0
      %435 = vmatpush1.bf16.msra.mxu0 %v395
      %436 = vmatprep.subr.bf16.mxu0 0
      %437 = vmatpush1.bf16.msra.mxu0 %v396
      %438 = vmatprep.subr.bf16.mxu0 0
      %439 = vmatpush1.bf16.msra.mxu0 %v397
      %440 = vmatprep.subr.bf16.mxu0 0
      %441 = vmatpush1.bf16.msra.mxu0 %v398
      %442 = vmatprep.subr.bf16.mxu0 0
      %443 = vmatpush1.bf16.msra.mxu0 %v399
      %444 = vmatprep.subr.bf16.mxu0 0
      %445 = vmatpush1.bf16.msra.mxu0 %v400
      %446 = vmatprep.subr.bf16.mxu0 0
      %447 = vmatpush1.bf16.msra.mxu0 %v401
      %448 = vmatprep.subr.bf16.mxu0 0
      %449 = vmatpush1.bf16.msra.mxu0 %v402
      %450 = vmatprep.subr.bf16.mxu0 0
      %451 = vmatpush1.bf16.msra.mxu0 %v403
      %452 = vmatprep.mubr.bf16.mxu0 %v289
      %453 = vmatmul.mubr.bf16.gmra.mrb[0].mxu0 %v288
      %v454 = vpop.f32.mrb[0].mxu0
      %v455 = vadd.f32 0.0, %v454
      %v456 = vpop.f32.mrb[0].mxu0
      %v457 = vpop.f32.mrb[0].mxu0
      %v458 = vadd.f32 0.0, %v457
      %v459 = vpop.f32.mrb[0].mxu0
      %460 = vmatprep.mubr.bf16.mxu0 %v291
      %461 = vmatmul.mubr.bf16.gmra.mrb[0].mxu0 %v290
      %v462 = vpop.f32.mrb[0].mxu0
      %v463 = vadd.f32 0.0, %v462
      %v464 = vpop.f32.mrb[0].mxu0
      %v465 = vpop.f32.mrb[0].mxu0
      %v466 = vadd.f32 0.0, %v465
      %v467 = vpop.f32.mrb[0].mxu0
      %468 = vdwg.mxu0
      %v469 = vld [vmem:[%s1] sm:$0x3]
      %v470 = vpack.c.bf16 %v458, %v455
      %v471 = vpack.c.bf16 %v466, %v463
      %vm472 = vcmask 261120
      %v474 = vsel %vm472, %v469, 0
      %476 = vmatprep.subr.bf16.mxu0 0
      %477 = vmatpush1.bf16.msra.mxu0 %v470
      %478 = vmatprep.subr.bf16.mxu0 0
      %479 = vmatpush1.bf16.msra.mxu0 %v471
      %480 = vmatprep.subr.bf16.mxu0 0
      %481 = vmatpush1.bf16.msra.mxu0 0
      %482 = vmatprep.subr.bf16.mxu0 0
      %483 = vmatpush1.bf16.msra.mxu0 0
      %484 = vmatprep.subr.bf16.mxu0 0
      %485 = vmatpush1.bf16.msra.mxu0 0
      %486 = vmatprep.subr.bf16.mxu0 0
      %487 = vmatpush1.bf16.msra.mxu0 0
      %488 = vmatprep.subr.bf16.mxu0 0
      %489 = vmatpush1.bf16.msra.mxu0 0
      %490 = vmatprep.subr.bf16.mxu0 0
      %491 = vmatpush1.bf16.msra.mxu0 0
      %492 = vmatprep.subr.bf16.mxu0 0
      %493 = vmatpush1.bf16.msra.mxu0 0
      %494 = vmatprep.subr.bf16.mxu0 0
      %495 = vmatpush1.bf16.msra.mxu0 0
      %496 = vmatprep.subr.bf16.mxu0 0
      %497 = vmatpush1.bf16.msra.mxu0 0
      %498 = vmatprep.subr.bf16.mxu0 0
      %499 = vmatpush1.bf16.msra.mxu0 0
      %500 = vmatprep.subr.bf16.mxu0 0
      %501 = vmatpush1.bf16.msra.mxu0 0
      %502 = vmatprep.subr.bf16.mxu0 0
      %503 = vmatpush1.bf16.msra.mxu0 0
      %504 = vmatprep.subr.bf16.mxu0 0
      %505 = vmatpush1.bf16.msra.mxu0 0
      %506 = vmatprep.subr.bf16.mxu0 0
      %507 = vmatpush1.bf16.msra.mxu0 0
      %508 = vmatprep.mubr.bf16.mxu0 0
      %509 = vmatmul.mubr.bf16.gmra.mrb[0].mxu0 %v474
      %v510 = vpop.f32.mrb[0].mxu0
      %v511 = vadd.f32 0.0, %v510
      %v512 = vpop.f32.mrb[0].mxu0
      %v513 = vpop.f32.mrb[0].mxu0
      %v514 = vpop.f32.mrb[0].mxu0
      %515 = vdwg.mxu0
      %v516 = vmax.f32 %v511, 0.0
      %v517 = vpack.c.bf16 %v516, %v516
      %v518 = vld [vmem:[%s2] sm:$0xf]
      %v519 = vld [vmem:[%s2 + $0x4] sm:$0xf]
      %v520 = vld [vmem:[%s2 + $0x8] sm:$0xf]
      %v521 = vld [vmem:[%s2 + $0xc] sm:$0xf]
      %v526 = vunpack.c.l.b16 %v518
      %v527 = vunpack.c.l.b16 %v519
      %v528 = vunpack.c.l.b16 %v520
      %v529 = vunpack.c.l.b16 %v521
      %v530 = vpack.c.b16 %v527, %v526
      %v531 = vpack.c.b16 %v529, %v528
      %vm532 = vcmask 31744
      %v534 = vsel %vm532, %v530, 0
      %v537 = vsel %vm532, %v531, 0
      %vm539 = vcmask 1041408
      %v541 = vsel %vm539, %v517, 0
      %543 = vmatprep.subr.bf16.mxu0 0
      %544 = vmatpush1.bf16.msra.mxu0 %v541
      %545 = vmatprep.subr.bf16.mxu0 0
      %546 = vmatpush1.bf16.msra.mxu0 0
      %547 = vmatprep.subr.bf16.mxu0 0
      %548 = vmatpush1.bf16.msra.mxu0 0
      %549 = vmatprep.subr.bf16.mxu0 0
      %550 = vmatpush1.bf16.msra.mxu0 0
      %551 = vmatprep.subr.bf16.mxu0 0
      %552 = vmatpush1.bf16.msra.mxu0 0
      %553 = vmatprep.subr.bf16.mxu0 0
      %554 = vmatpush1.bf16.msra.mxu0 0
      %555 = vmatprep.subr.bf16.mxu0 0
      %556 = vmatpush1.bf16.msra.mxu0 0
      %557 = vmatprep.subr.bf16.mxu0 0
      %558 = vmatpush1.bf16.msra.mxu0 0
      %559 = vmatprep.subr.bf16.mxu0 0
      %560 = vmatpush1.bf16.msra.mxu0 0
      %561 = vmatprep.subr.bf16.mxu0 0
      %562 = vmatpush1.bf16.msra.mxu0 0
      %563 = vmatprep.subr.bf16.mxu0 0
      %564 = vmatpush1.bf16.msra.mxu0 0
      %565 = vmatprep.subr.bf16.mxu0 0
      %566 = vmatpush1.bf16.msra.mxu0 0
      %567 = vmatprep.subr.bf16.mxu0 0
      %568 = vmatpush1.bf16.msra.mxu0 0
      %569 = vmatprep.subr.bf16.mxu0 0
      %570 = vmatpush1.bf16.msra.mxu0 0
      %571 = vmatprep.subr.bf16.mxu0 0
      %572 = vmatpush1.bf16.msra.mxu0 0
      %573 = vmatprep.subr.bf16.mxu0 0
      %574 = vmatpush1.bf16.msra.mxu0 0
      %575 = vmatprep.mubr.bf16.mxu0 0
      %576 = vmatmul.mubr.bf16.gmra.mrb[0].mxu0 %v534
      %v577 = vpop.f32.mrb[0].mxu0
      %v578 = vadd.f32 0.0, %v577
      %v579 = vpop.f32.mrb[0].mxu0
      %v580 = vpop.f32.mrb[0].mxu0
      %v581 = vadd.f32 0.0, %v580
      %v582 = vpop.f32.mrb[0].mxu0
      %583 = vmatprep.mubr.bf16.mxu0 0
      %584 = vmatmul.mubr.bf16.gmra.mrb[0].mxu0 %v537
      %v585 = vpop.f32.mrb[0].mxu0
      %v586 = vadd.f32 0.0, %v585
      %v587 = vpop.f32.mrb[0].mxu0
      %v588 = vpop.f32.mrb[0].mxu0
      %v589 = vadd.f32 0.0, %v588
      %v590 = vpop.f32.mrb[0].mxu0
      %591 = vdwg.mxu0
      %v592 = vxor.u32 %v578, 2147483648
      %v593 = vxor.u32 %v581, 2147483648
      %v594 = vxor.u32 %v586, 2147483648
      %v595 = vxor.u32 %v589, 2147483648
      %v596 = vmul.f32 %v592, 1.442695
      %v597 = vpow.pop %v596
      %v598 = vmul.f32 %v593, 1.442695
      %v599 = vpow.pop %v598
      %v600 = vmul.f32 %v594, 1.442695
      %v601 = vpow.pop %v600
      %v602 = vmul.f32 %v595, 1.442695
      %v603 = vpow.pop %v602
      %v604 = vadd.f32 %v597, 1.0
      %v605 = vadd.f32 %v599, 1.0
      %v606 = vadd.f32 %v601, 1.0
      %v607 = vadd.f32 %v603, 1.0
      %v608 = vrcp.pop %v604
      %v609 = vmul.f32 1.0, %v608
      %v610 = vrcp.pop %v605
      %v611 = vmul.f32 1.0, %v610
      %v612 = vrcp.pop %v606
      %v613 = vmul.f32 1.0, %v612
      %v614 = vrcp.pop %v607
      %v615 = vmul.f32 1.0, %v614
      %v616 = vld [vmem:[%s3] sm:$0xf]
      %v617 = vld [vmem:[%s3 + $0x4] sm:$0xf]
      %v618 = vld [vmem:[%s3 + $0x8] sm:$0xf]
      %v619 = vld [vmem:[%s3 + $0xc] sm:$0xf]
      %v624 = vunpack.c.l.b16 %v616
      %v625 = vunpack.c.l.b16 %v617
      %v626 = vunpack.c.l.b16 %v618
      %v627 = vunpack.c.l.b16 %v619
      %v628 = vpack.c.b16 %v625, %v624
      %v629 = vpack.c.b16 %v627, %v626
      %631 = vrot.lane.b32.xlu0 %v517, 112
      %v632 = vpop.permute.xlu0 %631
      %v634 = vsel %vm532, %v628, 0
      %v637 = vsel %vm532, %v629, 0
      %v640 = vsel %vm539, %v632, 0
      %642 = vmatprep.subr.bf16.mxu0 0
      %643 = vmatpush1.bf16.msra.mxu0 %v640
      %644 = vmatprep.subr.bf16.mxu0 0
      %645 = vmatpush1.bf16.msra.mxu0 0
      %646 = vmatprep.subr.bf16.mxu0 0
      %647 = vmatpush1.bf16.msra.mxu0 0
      %648 = vmatprep.subr.bf16.mxu0 0
      %649 = vmatpush1.bf16.msra.mxu0 0
      %650 = vmatprep.subr.bf16.mxu0 0
      %651 = vmatpush1.bf16.msra.mxu0 0
      %652 = vmatprep.subr.bf16.mxu0 0
      %653 = vmatpush1.bf16.msra.mxu0 0
      %654 = vmatprep.subr.bf16.mxu0 0
      %655 = vmatpush1.bf16.msra.mxu0 0
      %656 = vmatprep.subr.bf16.mxu0 0
      %657 = vmatpush1.bf16.msra.mxu0 0
      %658 = vmatprep.subr.bf16.mxu0 0
      %659 = vmatpush1.bf16.msra.mxu0 0
      %660 = vmatprep.subr.bf16.mxu0 0
      %661 = vmatpush1.bf16.msra.mxu0 0
      %662 = vmatprep.subr.bf16.mxu0 0
      %663 = vmatpush1.bf16.msra.mxu0 0
      %664 = vmatprep.subr.bf16.mxu0 0
      %665 = vmatpush1.bf16.msra.mxu0 0
      %666 = vmatprep.subr.bf16.mxu0 0
      %667 = vmatpush1.bf16.msra.mxu0 0
      %668 = vmatprep.subr.bf16.mxu0 0
      %669 = vmatpush1.bf16.msra.mxu0 0
      %670 = vmatprep.subr.bf16.mxu0 0
      %671 = vmatpush1.bf16.msra.mxu0 0
      %672 = vmatprep.subr.bf16.mxu0 0
      %673 = vmatpush1.bf16.msra.mxu0 0
      %674 = vmatprep.mubr.bf16.mxu0 0
      %675 = vmatmul.mubr.bf16.gmra.mrb[0].mxu0 %v634
      %v676 = vpop.f32.mrb[0].mxu0
      %v677 = vadd.f32 0.0, %v676
      %v678 = vpop.f32.mrb[0].mxu0
      %v679 = vpop.f32.mrb[0].mxu0
      %v680 = vadd.f32 0.0, %v679
      %v681 = vpop.f32.mrb[0].mxu0
      %682 = vmatprep.mubr.bf16.mxu0 0
      %683 = vmatmul.mubr.bf16.gmra.mrb[0].mxu0 %v637
      %v684 = vpop.f32.mrb[0].mxu0
      %v685 = vadd.f32 0.0, %v684
      %v686 = vpop.f32.mrb[0].mxu0
      %v687 = vpop.f32.mrb[0].mxu0
      %v688 = vadd.f32 0.0, %v687
      %v689 = vpop.f32.mrb[0].mxu0
      %690 = vdwg.mxu0
      %v691 = vxor.u32 %v677, 2147483648
      %v692 = vxor.u32 %v680, 2147483648
      %v693 = vxor.u32 %v685, 2147483648
      %v694 = vxor.u32 %v688, 2147483648
      %v695 = vmul.f32 %v691, 1.442695
      %v696 = vpow.pop %v695
      %v697 = vmul.f32 %v692, 1.442695
      %v698 = vpow.pop %v697
      %v699 = vmul.f32 %v693, 1.442695
      %v700 = vpow.pop %v699
      %v701 = vmul.f32 %v694, 1.442695
      %v702 = vpow.pop %v701
      %v703 = vadd.f32 %v696, 1.0
      %v704 = vadd.f32 %v698, 1.0
      %v705 = vadd.f32 %v700, 1.0
      %v706 = vadd.f32 %v702, 1.0
      %v707 = vrcp.pop %v703
      %v708 = vmul.f32 1.0, %v707
      %v709 = vrcp.pop %v704
      %v710 = vmul.f32 1.0, %v709
      %v711 = vrcp.pop %v705
      %v712 = vmul.f32 1.0, %v711
      %v713 = vrcp.pop %v706
      %v714 = vmul.f32 1.0, %v713
      %v715 = vpack.c.bf16 %v611, %v609
      %v716 = vpack.c.bf16 %v615, %v613
      %v717 = vld [vmem:[%s5] sm:$0xff]
      %v718 = vld [vmem:[%s5 + $0x8] sm:$0xff]
      %v721 = vunpack.c.l.b16 %v717
      %v722 = vunpack.c.h.b16 %v717
      %v723 = vunpack.c.l.b16 %v718
      %v724 = vunpack.c.h.b16 %v718
      %v725 = vpack.c.b16 %v723, %v721
      %v726 = vpack.c.b16 %v724, %v722
      %vm729 = vcmask 130048
      %v731 = vsel %vm729, %v715, 0
      %v734 = vsel %vm729, %v716, 0
      %736 = vmatprep.subr.bf16.mxu0 %v726
      %737 = vmatpush1.bf16.msra.mxu0 %v725
      %738 = vmatprep.subr.bf16.mxu0 0
      %739 = vmatpush1.bf16.msra.mxu0 0
      %740 = vmatprep.subr.bf16.mxu0 0
      %741 = vmatpush1.bf16.msra.mxu0 0
      %742 = vmatprep.subr.bf16.mxu0 0
      %743 = vmatpush1.bf16.msra.mxu0 0
      %744 = vmatprep.subr.bf16.mxu0 0
      %745 = vmatpush1.bf16.msra.mxu0 0
      %746 = vmatprep.subr.bf16.mxu0 0
      %747 = vmatpush1.bf16.msra.mxu0 0
      %748 = vmatprep.subr.bf16.mxu0 0
      %749 = vmatpush1.bf16.msra.mxu0 0
      %750 = vmatprep.subr.bf16.mxu0 0
      %751 = vmatpush1.bf16.msra.mxu0 0
      %752 = vmatprep.subr.bf16.mxu0 0
      %753 = vmatpush1.bf16.msra.mxu0 0
      %754 = vmatprep.subr.bf16.mxu0 0
      %755 = vmatpush1.bf16.msra.mxu0 0
      %756 = vmatprep.subr.bf16.mxu0 0
      %757 = vmatpush1.bf16.msra.mxu0 0
      %758 = vmatprep.subr.bf16.mxu0 0
      %759 = vmatpush1.bf16.msra.mxu0 0
      %760 = vmatprep.subr.bf16.mxu0 0
      %761 = vmatpush1.bf16.msra.mxu0 0
      %762 = vmatprep.subr.bf16.mxu0 0
      %763 = vmatpush1.bf16.msra.mxu0 0
      %764 = vmatprep.subr.bf16.mxu0 0
      %765 = vmatpush1.bf16.msra.mxu0 0
      %766 = vmatprep.subr.bf16.mxu0 0
      %767 = vmatpush1.bf16.msra.mxu0 0
      %768 = vmatprep.mubr.bf16.mxu0 0
      %769 = vmatmul.mubr.bf16.gmra.mrb[0].mxu0 %v731
      %v770 = vpop.f32.mrb[0].mxu0
      %v771 = vadd.f32 0.0, %v770
      %v772 = vpop.f32.mrb[0].mxu0
      %v773 = vadd.f32 0.0, %v772
      %v774 = vpop.f32.mrb[0].mxu0
      %v775 = vadd.f32 0.0, %v774
      %v776 = vpop.f32.mrb[0].mxu0
      %v777 = vadd.f32 0.0, %v776
      %778 = vmatprep.mubr.bf16.mxu0 0
      %779 = vmatmul.mubr.bf16.gmra.mrb[0].mxu0 %v734
      %v780 = vpop.f32.mrb[0].mxu0
      %v781 = vadd.f32 0.0, %v780
      %v782 = vpop.f32.mrb[0].mxu0
      %v783 = vadd.f32 0.0, %v782
      %v784 = vpop.f32.mrb[0].mxu0
      %v785 = vadd.f32 0.0, %v784
      %v786 = vpop.f32.mrb[0].mxu0
      %v787 = vadd.f32 0.0, %v786
      %788 = vdwg.mxu0
      %v789 = vpack.c.bf16 %v710, %v708
      %v790 = vpack.c.bf16 %v714, %v712
      %v791 = vld [vmem:[%s6] sm:$0xff]
      %v792 = vld [vmem:[%s6 + $0x8] sm:$0xff]
      %v795 = vunpack.c.l.b16 %v791
      %v796 = vunpack.c.h.b16 %v791
      %v797 = vunpack.c.l.b16 %v792
      %v798 = vunpack.c.h.b16 %v792
      %v799 = vpack.c.b16 %v797, %v795
      %v800 = vpack.c.b16 %v798, %v796
      %v804 = vsel %vm729, %v789, 0
      %v807 = vsel %vm729, %v790, 0
      %809 = vmatprep.subr.bf16.mxu0 %v800
      %810 = vmatpush1.bf16.msra.mxu0 %v799
      %811 = vmatprep.subr.bf16.mxu0 0
      %812 = vmatpush1.bf16.msra.mxu0 0
      %813 = vmatprep.subr.bf16.mxu0 0
      %814 = vmatpush1.bf16.msra.mxu0 0
      %815 = vmatprep.subr.bf16.mxu0 0
      %816 = vmatpush1.bf16.msra.mxu0 0
      %817 = vmatprep.subr.bf16.mxu0 0
      %818 = vmatpush1.bf16.msra.mxu0 0
      %819 = vmatprep.subr.bf16.mxu0 0
      %820 = vmatpush1.bf16.msra.mxu0 0
      %821 = vmatprep.subr.bf16.mxu0 0
      %822 = vmatpush1.bf16.msra.mxu0 0
      %823 = vmatprep.subr.bf16.mxu0 0
      %824 = vmatpush1.bf16.msra.mxu0 0
      %825 = vmatprep.subr.bf16.mxu0 0
      %826 = vmatpush1.bf16.msra.mxu0 0
      %827 = vmatprep.subr.bf16.mxu0 0
      %828 = vmatpush1.bf16.msra.mxu0 0
      %829 = vmatprep.subr.bf16.mxu0 0
      %830 = vmatpush1.bf16.msra.mxu0 0
      %831 = vmatprep.subr.bf16.mxu0 0
      %832 = vmatpush1.bf16.msra.mxu0 0
      %833 = vmatprep.subr.bf16.mxu0 0
      %834 = vmatpush1.bf16.msra.mxu0 0
      %835 = vmatprep.subr.bf16.mxu0 0
      %836 = vmatpush1.bf16.msra.mxu0 0
      %837 = vmatprep.subr.bf16.mxu0 0
      %838 = vmatpush1.bf16.msra.mxu0 0
      %839 = vmatprep.subr.bf16.mxu0 0
      %840 = vmatpush1.bf16.msra.mxu0 0
      %841 = vmatprep.mubr.bf16.mxu0 0
      %842 = vmatmul.mubr.bf16.gmra.mrb[0].mxu0 %v804
      %v843 = vpop.f32.mrb[0].mxu0
      %v844 = vadd.f32 0.0, %v843
      %v845 = vpop.f32.mrb[0].mxu0
      %v846 = vadd.f32 0.0, %v845
      %v847 = vpop.f32.mrb[0].mxu0
      %v848 = vadd.f32 0.0, %v847
      %v849 = vpop.f32.mrb[0].mxu0
      %v850 = vadd.f32 0.0, %v849
      %851 = vmatprep.mubr.bf16.mxu0 0
      %852 = vmatmul.mubr.bf16.gmra.mrb[0].mxu0 %v807
      %v853 = vpop.f32.mrb[0].mxu0
      %v854 = vadd.f32 0.0, %v853
      %v855 = vpop.f32.mrb[0].mxu0
      %v856 = vadd.f32 0.0, %v855
      %v857 = vpop.f32.mrb[0].mxu0
      %v858 = vadd.f32 0.0, %v857
      %v859 = vpop.f32.mrb[0].mxu0
      %v860 = vadd.f32 0.0, %v859
      %861 = vdwg.mxu0
      %v862 = vmul.f32 %v280, %v771
      %v863 = vmul.f32 %v281, %v773
      %v864 = vmul.f32 %v282, %v775
      %v865 = vmul.f32 %v283, %v777
      %v866 = vmul.f32 %v284, %v781
      %v867 = vmul.f32 %v285, %v783
      %v868 = vmul.f32 %v286, %v785
      %v869 = vmul.f32 %v287, %v787
      %v870 = vmul.f32 %v862, %v844
      %v871 = vmul.f32 %v863, %v846
      %v872 = vmul.f32 %v864, %v848
      %v873 = vmul.f32 %v865, %v850
      %v874 = vmul.f32 %v866, %v854
      %v875 = vmul.f32 %v867, %v856
      %v876 = vmul.f32 %v868, %v858
      %v877 = vmul.f32 %v869, %v860
      %878 = vst [vmem:[%s278] sm:$0xff] %v870
      %879 = vst [vmem:[%s278 + $0x8] sm:$0xff] %v871
      %880 = vst [vmem:[%s278 + $0x10] sm:$0xff] %v872
      %881 = vst [vmem:[%s278 + $0x18] sm:$0xff] %v873
      %882 = vst [vmem:[%s278 + $0x20] sm:$0xff] %v874
      %883 = vst [vmem:[%s278 + $0x28] sm:$0xff] %v875
      %884 = vst [vmem:[%s278 + $0x30] sm:$0xff] %v876
      %885 = vst [vmem:[%s278 + $0x38] sm:$0xff] %v877
      %p886 = scmp.lt.s32.totalorder %s18, 1
      %s887 = scalar_select %p886, %s18, 1
      %s888 = smul.addr %s887, 8
      %s889 = smul.addr %s888, 8
      %s890 = scalar_lea.vmem %s7, %s889
      // Predicated region
      $region49: #{ca_attention.1} parent=47 // pred_check
        %p891 = pneg %p188
      $region50: #{ca_attention.1} parent=47 // pred_check_branch
        %893 = sbr.rel (%p891) target = $region52
      $region51: #{ca_attention.1} parent=47 // pred_region
        _
      $region52: #{ca_attention.1} parent=47 // pred_fallthru
        _
    $region48: #{ca_attention.1} parent=5 // pred_fallthru
      _
    %p894 = scmp.le.s32.totalorder 2, %s13
    // Predicated region
    $region53: #{ca_attention.1} parent=5 // pred_check
      %p895 = pneg %p894
    $region54: #{ca_attention.1} parent=5 // pred_check_branch
      %897 = sbr.rel (%p895) target = $region56
    $region55: #{ca_attention.1} parent=5 // pred_region
      %s898 = ssub.s32 %s13, 2
      // Predicated region
      $region57: #{ca_attention.1} parent=55 // pred_check
        %p899 = pneg %p194
      $region58: #{ca_attention.1} parent=55 // pred_check_branch
        %901 = sbr.rel (%p899) target = $region60
      $region59: #{ca_attention.1} parent=55 // pred_region
        %p902 = scmp.lt.s32.totalorder %s19, 1
        %s903 = scalar_select %p902, %s19, 1
        %s904 = smul.addr %s903, 8
        %s905 = smul.addr %s904, 8
        %s906 = scalar_lea.vmem %s7, %s905
      $region60: #{ca_attention.1} parent=55 // pred_fallthru
        _
    $region56: #{ca_attention.1} parent=5 // pred_fallthru
      _
  $region6: #{ca_attention.1} parent=0 // loop_footer
    %s17 = sadd.s32 1, %s13
  $region7: #{ca_attention.1} parent=0 // loop_footer_branch
    %12 = sbr.rel target = $region3
  $region8: #{ca_attention.1} parent=0 // loop_exit
    _

</llo_original>
